<compile_context>
chip_gen: v5e
topology: v5e:2x2
jax: 0.10.0
libtpu: 0.0.40
codegen_flags: <defaults>
</compile_context>

<pallas_src>
import math

import jax
import jax.numpy as jnp
from jax.experimental import pallas as pl
from jax.experimental.pallas import tpu as pltpu

# ---------------- model hyper-parameters (small, deterministic) --------------
B = 2            # batch
S = 8            # target sequence length
S_SRC = 8        # source (encoder) sequence length
D = 32           # d_model ("features")
H = 4            # num heads
DK = D // H      # head dim
DFF = 64         # feed-forward hidden dim
EPS = 1e-6

N_TOK = B * S          # query tokens (flattened over batch)
N_SRC = B * S_SRC      # source tokens (flattened over batch) == N_TOK here
assert N_SRC == N_TOK  # shared head-expansion / block-ones masks

# ---- weight-slab row offsets (lane width 128) --------------------------------
R_WQKV1 = 0                   # (D, 3D)   LN1-folded, q pre-scaled
R_WO1 = R_WQKV1 + D           # (D, D)
R_WQ2 = R_WO1 + D             # (D, D)    LN2-folded, pre-scaled
R_WKV2 = R_WQ2 + D            # (D, 2D)
R_WO2 = R_WKV2 + D            # (D, D)
R_WFF1 = R_WO2 + D            # (D, DFF)  LN3-folded
R_WFF2 = R_WFF1 + D           # (DFF, D)
R_B_QKV1 = R_WFF2 + DFF       # (1, 3D)   bias rows, 8-aligned
R_B_Q2 = R_B_QKV1 + 8         # (1, D)
R_B_FF1 = R_B_Q2 + 8          # (1, DFF)
R_B_FF2 = R_B_FF1 + 8         # (1, D)
W_ROWS = R_B_FF2 + 8
W_LANES = 128

# ---- mask-slab row offsets (lane width H*N_TOK = 64) -------------------------
M_SELF = 0                    # (N_TOK, H*N_TOK)   additive tgt mask, head-tiled
M_CROSS = M_SELF + N_TOK      # (N_TOK, H*N_SRC)   additive src mask, head-tiled
M_HEAD = M_CROSS + N_TOK      # (H*N_TOK, D)       0/1 head-expansion lane mask
M_ONES = M_HEAD + H * N_TOK   # (H*N_TOK, H*N_TOK) block-diag ones (per-head sums)
M_ROWS = M_ONES + H * N_TOK
M_LANES = H * N_TOK


# ----------------------------- Pallas kernel ---------------------------------
def decoder_block_kernel(x_ref, enc_ref, m_ref, w_ref, out_ref):
    x = x_ref[...]            # (N_TOK, D) f32
    enc = enc_ref[...]        # (N_SRC, D) f32

    amask_self = m_ref[M_SELF:M_SELF + N_TOK, :]          # (N_TOK, H*N_TOK)
    amask_cross = m_ref[M_CROSS:M_CROSS + N_TOK, :]       # (N_TOK, H*N_SRC)
    head_mask = m_ref[M_HEAD:M_HEAD + H * N_TOK, :D]      # (H*Nk, D)
    ones_bd = m_ref[M_ONES:M_ONES + H * N_TOK, :]         # (H*Nk, H*Nk)

    def layernorm(v):
        # gamma/beta are folded into the downstream projection weights/biases.
        mu = jnp.mean(v, axis=-1, keepdims=True)
        var = jnp.mean((v - mu) ** 2, axis=-1, keepdims=True)
        return (v - mu) * jax.lax.rsqrt(var + EPS)

    def attention(q, k, v, amask):
        # q: (N, D); k, v: (Nk, D); amask: (N, H*Nk) additive, tiled per head.
        # Lane-dense head handling: expand K/V into block-diagonal (H*Nk, D)
        # layouts so all heads are covered by three MXU matmuls.
        nk = k.shape[0]
        kexp = jnp.concatenate([k] * H, axis=0) * head_mask   # (H*Nk, D)
        vexp = jnp.concatenate([v] * H, axis=0) * head_mask   # (H*Nk, D)
        s = jax.lax.dot_general(q, kexp, (((1,), (1,)), ((), ())),
                                preferred_element_type=jnp.float32)  # (N, H*Nk)
        s = s + amask
        # Global row max (over all heads' columns) is valid: per-head softmax
        # is invariant to any per-row shift.  Score spread is small here.
        s = s - jnp.max(s, axis=-1, keepdims=True)
        p = jnp.exp(s)
        denom = jnp.dot(p, ones_bd, preferred_element_type=jnp.float32)
        p = p / denom
        # (N, D), each head's output already in its lane block (== concat).
        return jnp.dot(p, vexp, preferred_element_type=jnp.float32)

    # --- residual 0: masked self-attention (pre-norm) -------------------------
    n1 = layernorm(x)
    qkv = (jnp.dot(n1, w_ref[R_WQKV1:R_WQKV1 + D, :3 * D],
                   preferred_element_type=jnp.float32)
           + w_ref[R_B_QKV1:R_B_QKV1 + 1, :3 * D])
    sa = attention(qkv[:, :D], qkv[:, D:2 * D], qkv[:, 2 * D:], amask_self)
    x = x + jnp.dot(sa, w_ref[R_WO1:R_WO1 + D, :D],
                    preferred_element_type=jnp.float32)

    # --- residual 1: cross-attention over encoder output ----------------------
    n2 = layernorm(x)
    q2 = (jnp.dot(n2, w_ref[R_WQ2:R_WQ2 + D, :D],
                  preferred_element_type=jnp.float32)
          + w_ref[R_B_Q2:R_B_Q2 + 1, :D])
    kv2 = jnp.dot(enc, w_ref[R_WKV2:R_WKV2 + D, :2 * D],
                  preferred_element_type=jnp.float32)
    ca = attention(q2, kv2[:, :D], kv2[:, D:], amask_cross)
    x = x + jnp.dot(ca, w_ref[R_WO2:R_WO2 + D, :D],
                    preferred_element_type=jnp.float32)

    # --- residual 2: feed forward ---------------------------------------------
    n3 = layernorm(x)
    h1 = jnp.maximum(
        jnp.dot(n3, w_ref[R_WFF1:R_WFF1 + D, :DFF],
                preferred_element_type=jnp.float32)
        + w_ref[R_B_FF1:R_B_FF1 + 1, :DFF],
        0.0)
    x = (x + jnp.dot(h1, w_ref[R_WFF2:R_WFF2 + DFF, :D],
                     preferred_element_type=jnp.float32)
         + w_ref[R_B_FF2:R_B_FF2 + 1, :D])

    out_ref[...] = x.astype(out_ref.dtype)


# -------------------- one-time host-side parameter / mask prep ----------------
def _pad_block(m, n_rows, n_lanes):
    m = m.astype(jnp.float32)
    r, c = m.shape
    return jnp.pad(m, ((0, n_rows - r), (0, n_lanes - c)))


def prepare_params(p):
    """Fuse projections, fold 1/sqrt(dk) and LN gamma/beta, pack into one slab."""
    scale = 1.0 / math.sqrt(DK)
    g1, b1 = p["ln1_g"], p["ln1_b"]
    g2, b2 = p["ln2_g"], p["ln2_b"]
    g3, b3 = p["ln3_g"], p["ln3_b"]

    wqkv1 = jnp.concatenate([p["wq1"] * scale, p["wk1"], p["wv1"]], axis=1)  # (D,3D)
    wqkv1_f = g1.reshape(D, 1) * wqkv1
    bqkv1 = b1 @ wqkv1                                                       # (1,3D)

    wq2_s = p["wq2"] * scale
    wq2_f = g2.reshape(D, 1) * wq2_s                                         # (D,D)
    bq2 = b2 @ wq2_s                                                         # (1,D)
    wkv2 = jnp.concatenate([p["wk2"], p["wv2"]], axis=1)                     # (D,2D)

    wff1_f = g3.reshape(D, 1) * p["w_ff1"]                                   # (D,DFF)
    bff1_f = b3 @ p["w_ff1"] + p["b_ff1"]                                    # (1,DFF)

    wslab = jnp.concatenate([
        _pad_block(wqkv1_f, D, W_LANES),
        _pad_block(p["wo1"], D, W_LANES),
        _pad_block(wq2_f, D, W_LANES),
        _pad_block(wkv2, D, W_LANES),
        _pad_block(p["wo2"], D, W_LANES),
        _pad_block(wff1_f, D, W_LANES),
        _pad_block(p["w_ff2"], DFF, W_LANES),
        _pad_block(bqkv1, 8, W_LANES),
        _pad_block(bq2, 8, W_LANES),
        _pad_block(bff1_f, 8, W_LANES),
        _pad_block(p["b_ff2"], 8, W_LANES),
    ], axis=0)
    assert wslab.shape == (W_ROWS, W_LANES)
    return wslab


def prepare_masks(tgt_mask, src_mask):
    """Block-diagonal (over batch) additive masks tiled per head + head masks."""
    def additive_blockdiag(mask):
        b, sq, sk = mask.shape
        eye = jnp.eye(b, dtype=mask.dtype)
        bd = jnp.einsum("bc,bqk->bqck", eye, mask).reshape(b * sq, b * sk)
        return (bd - 1.0) * 1e9

    am_self = jnp.tile(additive_blockdiag(tgt_mask), (1, H))    # (N_TOK, H*N_TOK)
    am_cross = jnp.tile(additive_blockdiag(src_mask), (1, H))   # (N_TOK, H*N_SRC)

    nk = N_TOK
    head_of_row = jnp.arange(H * nk) // nk
    head_of_lane = jnp.arange(D) // DK
    head_mask = (head_of_row[:, None] == head_of_lane[None, :]).astype(jnp.float32)
    ones_bd = (head_of_row[:, None] == head_of_row[None, :]).astype(jnp.float32)

    mslab = jnp.concatenate([
        _pad_block(am_self, N_TOK, M_LANES),
        _pad_block(am_cross, N_TOK, M_LANES),
        _pad_block(head_mask, H * nk, M_LANES),
        _pad_block(ones_bd, H * nk, M_LANES),
    ], axis=0)
    assert mslab.shape == (M_ROWS, M_LANES)
    return mslab


# ----------------------------- jitted hot path --------------------------------
@jax.jit
def decoder_block_pallas(x, enc, wslab, mslab):
    """x: (B,S,D), enc: (B,S_SRC,D); wslab/mslab from prepare_params/prepare_masks."""
    vmem = lambda: pl.BlockSpec(memory_space=pltpu.MemorySpace.VMEM)
    out = pl.pallas_call(
        decoder_block_kernel,
        out_shape=jax.ShapeDtypeStruct((B * S, D), jnp.float32),
        in_specs=[vmem(), vmem(), vmem(), vmem()],
        out_specs=vmem(),
    )(x.reshape(B * S, D), enc.reshape(B * S_SRC, D), mslab, wslab)
    return out.reshape(B, S, D)


# ------------------------- pure-JAX reference ---------------------------------
def decoder_block_ref(x, enc, tgt_mask, src_mask, p):
    def ln(v, g, b):
        mu = jnp.mean(v, axis=-1, keepdims=True)
        var = jnp.mean((v - mu) ** 2, axis=-1, keepdims=True)
        return (v - mu) / jnp.sqrt(var + EPS) * g + b

    def mha(q_in, kv_in, mask, wq, wk, wv, wo):
        Bq, Sq, _ = q_in.shape
        Sk = kv_in.shape[1]
        q = (q_in @ wq).reshape(Bq, Sq, H, DK).transpose(0, 2, 1, 3)
        k = (kv_in @ wk).reshape(Bq, Sk, H, DK).transpose(0, 2, 1, 3)
        v = (kv_in @ wv).reshape(Bq, Sk, H, DK).transpose(0, 2, 1, 3)
        s = jnp.einsum("bhqd,bhkd->bhqk", q, k) / math.sqrt(DK)
        s = jnp.where(mask[:, None, :, :] > 0, s, -1e9)
        p_ = jax.nn.softmax(s, axis=-1)
        o = jnp.einsum("bhqk,bhkd->bhqd", p_, v)
        o = o.transpose(0, 2, 1, 3).reshape(Bq, Sq, D)
        return o @ wo

    x = x + mha(ln(x, p["ln1_g"], p["ln1_b"]), ln(x, p["ln1_g"], p["ln1_b"]),
                tgt_mask, p["wq1"], p["wk1"], p["wv1"], p["wo1"])
    x = x + mha(ln(x, p["ln2_g"], p["ln2_b"]), enc,
                src_mask, p["wq2"], p["wk2"], p["wv2"], p["wo2"])
    n3 = ln(x, p["ln3_g"], p["ln3_b"])
    ff = jnp.maximum(n3 @ p["w_ff1"] + p["b_ff1"], 0.0) @ p["w_ff2"] + p["b_ff2"]
    return x + ff


# ------------------------------- main -----------------------------------------
if __name__ == "__main__":
    key = jax.random.PRNGKey(0)
    ks = jax.random.split(key, 20)

    def nrm(k, shape, scale=0.05):
        return jax.random.normal(k, shape, dtype=jnp.float32) * scale

    params = {
        "ln1_g": 1.0 + nrm(ks[0], (1, D)), "ln1_b": nrm(ks[1], (1, D)),
        "wq1": nrm(ks[2], (D, D)), "wk1": nrm(ks[3], (D, D)),
        "wv1": nrm(ks[4], (D, D)), "wo1": nrm(ks[5], (D, D)),
        "ln2_g": 1.0 + nrm(ks[6], (1, D)), "ln2_b": nrm(ks[7], (1, D)),
        "wq2": nrm(ks[8], (D, D)), "wk2": nrm(ks[9], (D, D)),
        "wv2": nrm(ks[10], (D, D)), "wo2": nrm(ks[11], (D, D)),
        "ln3_g": 1.0 + nrm(ks[12], (1, D)), "ln3_b": nrm(ks[13], (1, D)),
        "w_ff1": nrm(ks[14], (D, DFF)), "b_ff1": nrm(ks[15], (1, DFF)),
        "w_ff2": nrm(ks[16], (DFF, D)), "b_ff2": nrm(ks[17], (1, D)),
    }

    x = jax.random.normal(ks[18], (B, S, D), dtype=jnp.float32)
    enc = jax.random.normal(ks[19], (B, S_SRC, D), dtype=jnp.float32)

    # causal target mask (B,S,S); full source mask (B,S,S_SRC)
    tgt_mask = jnp.broadcast_to(
        jnp.tril(jnp.ones((S, S), dtype=jnp.float32)), (B, S, S))
    src_mask = jnp.ones((B, S, S_SRC), dtype=jnp.float32)

    # One-time prep (outside the per-call hot path).
    wslab = jax.block_until_ready(prepare_params(params))
    mslab = jax.block_until_ready(prepare_masks(tgt_mask, src_mask))

    out = decoder_block_pallas(x, enc, wslab, mslab)
    out = jax.block_until_ready(out)

    ref = decoder_block_ref(x, enc, tgt_mask, src_mask, params)
    assert out.shape == (B, S, D)
    assert jnp.allclose(out, ref, atol=1e-3, rtol=1e-3), "mismatch vs JAX reference"

    print("KERNEL_OK")
</pallas_src>

<mosaic_0001>
module attributes {stable_mosaic.version = 11 : i64} {
  func.func @decoder_block_kernel(%arg0: memref<16x32xf32, #tpu.memory_space<vmem>>, %arg1: memref<16x32xf32, #tpu.memory_space<vmem>>, %arg2: memref<160x64xf32, #tpu.memory_space<vmem>>, %arg3: memref<288x128xf32, #tpu.memory_space<vmem>>, %arg4: memref<16x32xf32, #tpu.memory_space<vmem>>) attributes {dimension_semantics = [], scalar_prefetch = 0 : i64, scratch_operands = 0 : i64, tpu.core_type = #tpu.core_type<tc>} {
    %c0 = arith.constant 0 : index
    %c0_0 = arith.constant 0 : index
    %0 = vector.load %arg0[%c0, %c0_0] : memref<16x32xf32, #tpu.memory_space<vmem>>, vector<16x32xf32>
    %c0_1 = arith.constant 0 : index
    %c0_2 = arith.constant 0 : index
    %1 = vector.load %arg1[%c0_1, %c0_2] : memref<16x32xf32, #tpu.memory_space<vmem>>, vector<16x32xf32>
    %c0_3 = arith.constant 0 : index
    %c0_4 = arith.constant 0 : index
    %2 = vector.load %arg2[%c0_3, %c0_4] : memref<160x64xf32, #tpu.memory_space<vmem>>, vector<16x64xf32>
    %c16 = arith.constant 16 : index
    %c0_5 = arith.constant 0 : index
    %3 = vector.load %arg2[%c16, %c0_5] : memref<160x64xf32, #tpu.memory_space<vmem>>, vector<16x64xf32>
    %c32 = arith.constant 32 : index
    %c0_6 = arith.constant 0 : index
    %4 = vector.load %arg2[%c32, %c0_6] : memref<160x64xf32, #tpu.memory_space<vmem>>, vector<64x32xf32>
    %c96 = arith.constant 96 : index
    %c0_7 = arith.constant 0 : index
    %5 = vector.load %arg2[%c96, %c0_7] : memref<160x64xf32, #tpu.memory_space<vmem>>, vector<64x64xf32>
    %cst = arith.constant dense<0.000000e+00> : vector<16xf32>
    %6 = vector.multi_reduction <add>, %0, %cst [1] : vector<16x32xf32> to vector<16xf32>
    %7 = vector.shape_cast %6 : vector<16xf32> to vector<16x1xf32>
    %cst_8 = arith.constant 3.200000e+01 : f32
    %8 = vector.broadcast %cst_8 : f32 to vector<16x1xf32>
    %9 = arith.divf %7, %8 : vector<16x1xf32>
    %10 = vector.broadcast %9 : vector<16x1xf32> to vector<16x32xf32>
    %11 = arith.subf %0, %10 : vector<16x32xf32>
    %12 = arith.mulf %11, %11 : vector<16x32xf32>
    %cst_9 = arith.constant dense<0.000000e+00> : vector<16xf32>
    %13 = vector.multi_reduction <add>, %12, %cst_9 [1] : vector<16x32xf32> to vector<16xf32>
    %14 = vector.shape_cast %13 : vector<16xf32> to vector<16x1xf32>
    %cst_10 = arith.constant 3.200000e+01 : f32
    %15 = vector.broadcast %cst_10 : f32 to vector<16x1xf32>
    %16 = arith.divf %14, %15 : vector<16x1xf32>
    %17 = vector.broadcast %9 : vector<16x1xf32> to vector<16x32xf32>
    %18 = arith.subf %0, %17 : vector<16x32xf32>
    %cst_11 = arith.constant 9.99999997E-7 : f32
    %19 = vector.broadcast %cst_11 : f32 to vector<16x1xf32>
    %20 = arith.addf %16, %19 : vector<16x1xf32>
    %21 = math.rsqrt %20 : vector<16x1xf32>
    %22 = vector.broadcast %21 : vector<16x1xf32> to vector<16x32xf32>
    %23 = arith.mulf %18, %22 : vector<16x32xf32>
    %c0_12 = arith.constant 0 : index
    %c0_13 = arith.constant 0 : index
    %24 = vector.load %arg3[%c0_12, %c0_13] : memref<288x128xf32, #tpu.memory_space<vmem>>, vector<32x96xf32>
    %cst_14 = arith.constant dense<0.000000e+00> : vector<16x96xf32>
    %25 = tpu.matmul %23, %24, %cst_14 {dimension_numbers = #tpu.dot_dimension_numbers<[1], [0], [0], [1], [0, 0, 1, 1], [], []>} : vector<16x32xf32>, vector<32x96xf32>, vector<16x96xf32> -> vector<16x96xf32>
    %c256 = arith.constant 256 : index
    %c0_15 = arith.constant 0 : index
    %26 = vector.load %arg3[%c256, %c0_15] : memref<288x128xf32, #tpu.memory_space<vmem>>, vector<1x96xf32>
    %27 = vector.broadcast %26 : vector<1x96xf32> to vector<16x96xf32>
    %28 = arith.addf %25, %27 : vector<16x96xf32>
    %29 = vector.extract_strided_slice %28 {offsets = [0, 0], sizes = [16, 32], strides = [1, 1]} : vector<16x96xf32> to vector<16x32xf32>
    %30 = vector.extract_strided_slice %28 {offsets = [0, 32], sizes = [16, 32], strides = [1, 1]} : vector<16x96xf32> to vector<16x32xf32>
    %31 = vector.extract_strided_slice %28 {offsets = [0, 64], sizes = [16, 32], strides = [1, 1]} : vector<16x96xf32> to vector<16x32xf32>
    %32 = tpu.concatenate %30, %30, %30, %30 in 0 : vector<16x32xf32>, vector<16x32xf32>, vector<16x32xf32>, vector<16x32xf32> -> vector<64x32xf32>
    %33 = arith.mulf %32, %4 : vector<64x32xf32>
    %34 = tpu.concatenate %31, %31, %31, %31 in 0 : vector<16x32xf32>, vector<16x32xf32>, vector<16x32xf32>, vector<16x32xf32> -> vector<64x32xf32>
    %35 = arith.mulf %34, %4 : vector<64x32xf32>
    %cst_16 = arith.constant dense<0.000000e+00> : vector<16x64xf32>
    %36 = tpu.matmul %29, %33, %cst_16 {dimension_numbers = #tpu.dot_dimension_numbers<[1], [1], [0], [0], [0, 0, 1, 0], [], []>} : vector<16x32xf32>, vector<64x32xf32>, vector<16x64xf32> -> vector<16x64xf32>
    %37 = arith.addf %36, %2 : vector<16x64xf32>
    %cst_17 = arith.constant dense<0xFF800000> : vector<16xf32>
    %38 = vector.multi_reduction <maximumf>, %37, %cst_17 [1] : vector<16x64xf32> to vector<16xf32>
    %39 = vector.shape_cast %38 : vector<16xf32> to vector<16x1xf32>
    %40 = vector.broadcast %39 : vector<16x1xf32> to vector<16x64xf32>
    %41 = arith.subf %37, %40 : vector<16x64xf32>
    %42 = math.exp %41 : vector<16x64xf32>
    %cst_18 = arith.constant dense<0.000000e+00> : vector<16x64xf32>
    %43 = tpu.matmul %42, %5, %cst_18 {dimension_numbers = #tpu.dot_dimension_numbers<[1], [0], [0], [1], [0, 0, 1, 1], [], []>} : vector<16x64xf32>, vector<64x64xf32>, vector<16x64xf32> -> vector<16x64xf32>
    %44 = arith.divf %42, %43 : vector<16x64xf32>
    %cst_19 = arith.constant dense<0.000000e+00> : vector<16x32xf32>
    %45 = tpu.matmul %44, %35, %cst_19 {dimension_numbers = #tpu.dot_dimension_numbers<[1], [0], [0], [1], [0, 0, 1, 1], [], []>} : vector<16x64xf32>, vector<64x32xf32>, vector<16x32xf32> -> vector<16x32xf32>
    %c32_20 = arith.constant 32 : index
    %c0_21 = arith.constant 0 : index
    %46 = vector.load %arg3[%c32_20, %c0_21] : memref<288x128xf32, #tpu.memory_space<vmem>>, vector<32x32xf32>
    %cst_22 = arith.constant dense<0.000000e+00> : vector<16x32xf32>
    %47 = tpu.matmul %45, %46, %cst_22 {dimension_numbers = #tpu.dot_dimension_numbers<[1], [0], [0], [1], [0, 0, 1, 1], [], []>} : vector<16x32xf32>, vector<32x32xf32>, vector<16x32xf32> -> vector<16x32xf32>
    %48 = arith.addf %0, %47 : vector<16x32xf32>
    %cst_23 = arith.constant dense<0.000000e+00> : vector<16xf32>
    %49 = vector.multi_reduction <add>, %48, %cst_23 [1] : vector<16x32xf32> to vector<16xf32>
    %50 = vector.shape_cast %49 : vector<16xf32> to vector<16x1xf32>
    %cst_24 = arith.constant 3.200000e+01 : f32
    %51 = vector.broadcast %cst_24 : f32 to vector<16x1xf32>
    %52 = arith.divf %50, %51 : vector<16x1xf32>
    %53 = vector.broadcast %52 : vector<16x1xf32> to vector<16x32xf32>
    %54 = arith.subf %48, %53 : vector<16x32xf32>
    %55 = arith.mulf %54, %54 : vector<16x32xf32>
    %cst_25 = arith.constant dense<0.000000e+00> : vector<16xf32>
    %56 = vector.multi_reduction <add>, %55, %cst_25 [1] : vector<16x32xf32> to vector<16xf32>
    %57 = vector.shape_cast %56 : vector<16xf32> to vector<16x1xf32>
    %cst_26 = arith.constant 3.200000e+01 : f32
    %58 = vector.broadcast %cst_26 : f32 to vector<16x1xf32>
    %59 = arith.divf %57, %58 : vector<16x1xf32>
    %60 = vector.broadcast %52 : vector<16x1xf32> to vector<16x32xf32>
    %61 = arith.subf %48, %60 : vector<16x32xf32>
    %cst_27 = arith.constant 9.99999997E-7 : f32
    %62 = vector.broadcast %cst_27 : f32 to vector<16x1xf32>
    %63 = arith.addf %59, %62 : vector<16x1xf32>
    %64 = math.rsqrt %63 : vector<16x1xf32>
    %65 = vector.broadcast %64 : vector<16x1xf32> to vector<16x32xf32>
    %66 = arith.mulf %61, %65 : vector<16x32xf32>
    %c64 = arith.constant 64 : index
    %c0_28 = arith.constant 0 : index
    %67 = vector.load %arg3[%c64, %c0_28] : memref<288x128xf32, #tpu.memory_space<vmem>>, vector<32x32xf32>
    %cst_29 = arith.constant dense<0.000000e+00> : vector<16x32xf32>
    %68 = tpu.matmul %66, %67, %cst_29 {dimension_numbers = #tpu.dot_dimension_numbers<[1], [0], [0], [1], [0, 0, 1, 1], [], []>} : vector<16x32xf32>, vector<32x32xf32>, vector<16x32xf32> -> vector<16x32xf32>
    %c264 = arith.constant 264 : index
    %c0_30 = arith.constant 0 : index
    %69 = vector.load %arg3[%c264, %c0_30] : memref<288x128xf32, #tpu.memory_space<vmem>>, vector<1x32xf32>
    %70 = vector.broadcast %69 : vector<1x32xf32> to vector<16x32xf32>
    %71 = arith.addf %68, %70 : vector<16x32xf32>
    %c96_31 = arith.constant 96 : index
    %c0_32 = arith.constant 0 : index
    %72 = vector.load %arg3[%c96_31, %c0_32] : memref<288x128xf32, #tpu.memory_space<vmem>>, vector<32x64xf32>
    %cst_33 = arith.constant dense<0.000000e+00> : vector<16x64xf32>
    %73 = tpu.matmul %1, %72, %cst_33 {dimension_numbers = #tpu.dot_dimension_numbers<[1], [0], [0], [1], [0, 0, 1, 1], [], []>} : vector<16x32xf32>, vector<32x64xf32>, vector<16x64xf32> -> vector<16x64xf32>
    %74 = vector.extract_strided_slice %73 {offsets = [0, 0], sizes = [16, 32], strides = [1, 1]} : vector<16x64xf32> to vector<16x32xf32>
    %75 = vector.extract_strided_slice %73 {offsets = [0, 32], sizes = [16, 32], strides = [1, 1]} : vector<16x64xf32> to vector<16x32xf32>
    %76 = tpu.concatenate %74, %74, %74, %74 in 0 : vector<16x32xf32>, vector<16x32xf32>, vector<16x32xf32>, vector<16x32xf32> -> vector<64x32xf32>
    %77 = arith.mulf %76, %4 : vector<64x32xf32>
    %78 = tpu.concatenate %75, %75, %75, %75 in 0 : vector<16x32xf32>, vector<16x32xf32>, vector<16x32xf32>, vector<16x32xf32> -> vector<64x32xf32>
    %79 = arith.mulf %78, %4 : vector<64x32xf32>
    %cst_34 = arith.constant dense<0.000000e+00> : vector<16x64xf32>
    %80 = tpu.matmul %71, %77, %cst_34 {dimension_numbers = #tpu.dot_dimension_numbers<[1], [1], [0], [0], [0, 0, 1, 0], [], []>} : vector<16x32xf32>, vector<64x32xf32>, vector<16x64xf32> -> vector<16x64xf32>
    %81 = arith.addf %80, %3 : vector<16x64xf32>
    %cst_35 = arith.constant dense<0xFF800000> : vector<16xf32>
    %82 = vector.multi_reduction <maximumf>, %81, %cst_35 [1] : vector<16x64xf32> to vector<16xf32>
    %83 = vector.shape_cast %82 : vector<16xf32> to vector<16x1xf32>
    %84 = vector.broadcast %83 : vector<16x1xf32> to vector<16x64xf32>
    %85 = arith.subf %81, %84 : vector<16x64xf32>
    %86 = math.exp %85 : vector<16x64xf32>
    %cst_36 = arith.constant dense<0.000000e+00> : vector<16x64xf32>
    %87 = tpu.matmul %86, %5, %cst_36 {dimension_numbers = #tpu.dot_dimension_numbers<[1], [0], [0], [1], [0, 0, 1, 1], [], []>} : vector<16x64xf32>, vector<64x64xf32>, vector<16x64xf32> -> vector<16x64xf32>
    %88 = arith.divf %86, %87 : vector<16x64xf32>
    %cst_37 = arith.constant dense<0.000000e+00> : vector<16x32xf32>
    %89 = tpu.matmul %88, %79, %cst_37 {dimension_numbers = #tpu.dot_dimension_numbers<[1], [0], [0], [1], [0, 0, 1, 1], [], []>} : vector<16x64xf32>, vector<64x32xf32>, vector<16x32xf32> -> vector<16x32xf32>
    %c128 = arith.constant 128 : index
    %c0_38 = arith.constant 0 : index
    %90 = vector.load %arg3[%c128, %c0_38] : memref<288x128xf32, #tpu.memory_space<vmem>>, vector<32x32xf32>
    %cst_39 = arith.constant dense<0.000000e+00> : vector<16x32xf32>
    %91 = tpu.matmul %89, %90, %cst_39 {dimension_numbers = #tpu.dot_dimension_numbers<[1], [0], [0], [1], [0, 0, 1, 1], [], []>} : vector<16x32xf32>, vector<32x32xf32>, vector<16x32xf32> -> vector<16x32xf32>
    %92 = arith.addf %48, %91 : vector<16x32xf32>
    %cst_40 = arith.constant dense<0.000000e+00> : vector<16xf32>
    %93 = vector.multi_reduction <add>, %92, %cst_40 [1] : vector<16x32xf32> to vector<16xf32>
    %94 = vector.shape_cast %93 : vector<16xf32> to vector<16x1xf32>
    %cst_41 = arith.constant 3.200000e+01 : f32
    %95 = vector.broadcast %cst_41 : f32 to vector<16x1xf32>
    %96 = arith.divf %94, %95 : vector<16x1xf32>
    %97 = vector.broadcast %96 : vector<16x1xf32> to vector<16x32xf32>
    %98 = arith.subf %92, %97 : vector<16x32xf32>
    %99 = arith.mulf %98, %98 : vector<16x32xf32>
    %cst_42 = arith.constant dense<0.000000e+00> : vector<16xf32>
    %100 = vector.multi_reduction <add>, %99, %cst_42 [1] : vector<16x32xf32> to vector<16xf32>
    %101 = vector.shape_cast %100 : vector<16xf32> to vector<16x1xf32>
    %cst_43 = arith.constant 3.200000e+01 : f32
    %102 = vector.broadcast %cst_43 : f32 to vector<16x1xf32>
    %103 = arith.divf %101, %102 : vector<16x1xf32>
    %104 = vector.broadcast %96 : vector<16x1xf32> to vector<16x32xf32>
    %105 = arith.subf %92, %104 : vector<16x32xf32>
    %cst_44 = arith.constant 9.99999997E-7 : f32
    %106 = vector.broadcast %cst_44 : f32 to vector<16x1xf32>
    %107 = arith.addf %103, %106 : vector<16x1xf32>
    %108 = math.rsqrt %107 : vector<16x1xf32>
    %109 = vector.broadcast %108 : vector<16x1xf32> to vector<16x32xf32>
    %110 = arith.mulf %105, %109 : vector<16x32xf32>
    %c160 = arith.constant 160 : index
    %c0_45 = arith.constant 0 : index
    %111 = vector.load %arg3[%c160, %c0_45] : memref<288x128xf32, #tpu.memory_space<vmem>>, vector<32x64xf32>
    %cst_46 = arith.constant dense<0.000000e+00> : vector<16x64xf32>
    %112 = tpu.matmul %110, %111, %cst_46 {dimension_numbers = #tpu.dot_dimension_numbers<[1], [0], [0], [1], [0, 0, 1, 1], [], []>} : vector<16x32xf32>, vector<32x64xf32>, vector<16x64xf32> -> vector<16x64xf32>
    %c272 = arith.constant 272 : index
    %c0_47 = arith.constant 0 : index
    %113 = vector.load %arg3[%c272, %c0_47] : memref<288x128xf32, #tpu.memory_space<vmem>>, vector<1x64xf32>
    %114 = vector.broadcast %113 : vector<1x64xf32> to vector<16x64xf32>
    %115 = arith.addf %112, %114 : vector<16x64xf32>
    %cst_48 = arith.constant 0.000000e+00 : f32
    %116 = vector.broadcast %cst_48 : f32 to vector<16x64xf32>
    %117 = arith.maximumf %115, %116 : vector<16x64xf32>
    %c192 = arith.constant 192 : index
    %c0_49 = arith.constant 0 : index
    %118 = vector.load %arg3[%c192, %c0_49] : memref<288x128xf32, #tpu.memory_space<vmem>>, vector<64x32xf32>
    %cst_50 = arith.constant dense<0.000000e+00> : vector<16x32xf32>
    %119 = tpu.matmul %117, %118, %cst_50 {dimension_numbers = #tpu.dot_dimension_numbers<[1], [0], [0], [1], [0, 0, 1, 1], [], []>} : vector<16x64xf32>, vector<64x32xf32>, vector<16x32xf32> -> vector<16x32xf32>
    %120 = arith.addf %92, %119 : vector<16x32xf32>
    %c280 = arith.constant 280 : index
    %c0_51 = arith.constant 0 : index
    %121 = vector.load %arg3[%c280, %c0_51] : memref<288x128xf32, #tpu.memory_space<vmem>>, vector<1x32xf32>
    %122 = vector.broadcast %121 : vector<1x32xf32> to vector<16x32xf32>
    %123 = arith.addf %120, %122 : vector<16x32xf32>
    %c0_52 = arith.constant 0 : index
    %c0_53 = arith.constant 0 : index
    %124 = vector.load %arg4[%c0_52, %c0_53] : memref<16x32xf32, #tpu.memory_space<vmem>>, vector<16x32xf32>
    tpu.vector_store %arg4[%c0_52, %c0_53], %123 {strides = array<i32>} : memref<16x32xf32, #tpu.memory_space<vmem>>, vector<16x32xf32>,
    return
  }
}

</mosaic_0001>

<llo_original>
// kernel: decoder_block_pallas.1
$region0: #{decoder_block_pallas.1}
  #allocation0 [shape = 'u32[]', space=smem, size = 0x4, offset = 0x4, fixed_abs, tag = 'smem constant byte address 0x4 - core index']
  #allocation1 [shape = 'u32[72,128]{1,0:T(1,128)}', space=vmem, size = 0x9000, scoped, tag = 'internal scratch']
  %s0 = inlined_call_operand.hbm [shape: f32[16,32], index: 0, kind: input, shape index: {}]
  %s1 = inlined_call_operand.hbm [shape: f32[16,32], index: 1, kind: input, shape index: {}]
  %s2 = inlined_call_operand.vmem [shape: f32[160,64], index: 2, kind: input, shape index: {}]
  %s3 = inlined_call_operand.vmem [shape: f32[288,128], index: 3, kind: input, shape index: {}]
  %s4 = inlined_call_operand.hbm [shape: f32[16,32], index: 4, kind: output, shape index: {}]
  %s5 = sld [smem:[#allocation0]]
  $region34: #{decoder_block_pallas.1} parent=0
    _
  %s7 = ssub.s32 1, %s5
  %s8 = scalar_select 0, %s7, %s5
  $region1: #{decoder_block_pallas.1} parent=0
    #allocation2 [shape = 'u8[8192]{0}', space=vmem, size = 0x2000, scoped, tag = 'input window, operand 0, single buffered']
    #allocation3 [shape = 's32[1]{0}', space=sflag, size = 0x4, scoped, tag = 'scoped memory for decoder_block_pallas.1']
    #allocation4 [shape = 's32[1]{0}', space=sflag, size = 0x4, scoped, tag = 'scoped memory for decoder_block_pallas.1']
    #allocation5 [shape = 'u8[8192]{0}', space=vmem, size = 0x2000, scoped, tag = 'input window, operand 1, single buffered']
    #allocation6 [shape = 's32[1]{0}', space=sflag, size = 0x4, scoped, tag = 'scoped memory for decoder_block_pallas.1']
    #allocation7 [shape = 'u8[8192]{0}', space=vmem, size = 0x2000, scoped, tag = 'output window, operand 0, single buffered']
    %9 = vsyncpa [#allocation3], 0
    %10 = vsyncpa [#allocation6], 0
    %11 = vsyncpa [#allocation4], 0
    // Predicated region
    $region2: #{decoder_block_pallas.1} parent=1 // pred_check
      _
    $region3: #{decoder_block_pallas.1} parent=1 // pred_check_branch
      %13 = sbr.rel (0) target = $region5
    $region4: #{decoder_block_pallas.1} parent=1 // pred_region
      %15 = vsyncadd [#allocation3], 0
      %s16 = sshll.u32 %s0, 4
      %s17 = int_to_ptr.hbm [resolvable:$true] %s16
      %s18 = sshll.u32 [#allocation2], 4
      %s19 = int_to_ptr.vmem [resolvable:$true] %s18
      %24 = dma.hbm_to_vmem [thread:$0]  %s17, 256, %s19, [#allocation3], 128, 128, 8
    $region5: #{decoder_block_pallas.1} parent=1 // pred_fallthru
      _
    // Predicated region
    $region6: #{decoder_block_pallas.1} parent=1 // pred_check
      _
    $region7: #{decoder_block_pallas.1} parent=1 // pred_check_branch
      %26 = sbr.rel (0) target = $region9
    $region8: #{decoder_block_pallas.1} parent=1 // pred_region
      %28 = vsyncadd [#allocation6], 0
      %s29 = sshll.u32 %s1, 4
      %s30 = int_to_ptr.hbm [resolvable:$true] %s29
      %s31 = sshll.u32 [#allocation5], 4
      %s32 = int_to_ptr.vmem [resolvable:$true] %s31
      %37 = dma.hbm_to_vmem [thread:$0]  %s30, 256, %s32, [#allocation6], 128, 128, 8
    $region9: #{decoder_block_pallas.1} parent=1 // pred_fallthru
      _
    // Predicated region
    $region10: #{decoder_block_pallas.1} parent=1 // pred_check
      _
    $region11: #{decoder_block_pallas.1} parent=1 // pred_check_branch
      %39 = sbr.rel (0) target = $region13
    $region12: #{decoder_block_pallas.1} parent=1 // pred_region
      _
    $region13: #{decoder_block_pallas.1} parent=1 // pred_fallthru
      _
    // Predicated region
    $region14: #{decoder_block_pallas.1} parent=1 // pred_check
      _
    $region15: #{decoder_block_pallas.1} parent=1 // pred_check_branch
      %41 = sbr.rel (0) target = $region17
    $region16: #{decoder_block_pallas.1} parent=1 // pred_region
      _
    $region17: #{decoder_block_pallas.1} parent=1 // pred_fallthru
      _
    // Predicated region
    $region18: #{decoder_block_pallas.1} parent=1 // pred_check
      _
    $region19: #{decoder_block_pallas.1} parent=1 // pred_check_branch
      %43 = sbr.rel (0) target = $region21
    $region20: #{decoder_block_pallas.1} parent=1 // pred_region
      %45 = dma.done [#allocation3], 256
    $region21: #{decoder_block_pallas.1} parent=1 // pred_fallthru
      _
    // Predicated region
    $region22: #{decoder_block_pallas.1} parent=1 // pred_check
      _
    $region23: #{decoder_block_pallas.1} parent=1 // pred_check_branch
      %47 = sbr.rel (0) target = $region25
    $region24: #{decoder_block_pallas.1} parent=1 // pred_region
      %49 = dma.done [#allocation6], 256
    $region25: #{decoder_block_pallas.1} parent=1 // pred_fallthru
      _
    %v50 = vld [vmem:[#allocation2] sm:$0xff]
    %v51 = vld [vmem:[#allocation2 + $0x8] sm:$0xff]
    %v52 = vld [vmem:[#allocation5] sm:$0xff]
    %v53 = vld [vmem:[#allocation5 + $0x8] sm:$0xff]
    %v54 = vld [vmem:[%s2] sm:$0xff]
    %v55 = vld [vmem:[%s2 + $0x8] sm:$0xff]
    %v56 = vld [vmem:[%s2 + $0x10] sm:$0xff]
    %v57 = vld [vmem:[%s2 + $0x18] sm:$0xff]
    %v58 = vld [vmem:[%s2 + $0x20] sm:$0xff]
    %v59 = vld [vmem:[%s2 + $0x28] sm:$0xff]
    %v60 = vld [vmem:[%s2 + $0x30] sm:$0xff]
    %v61 = vld [vmem:[%s2 + $0x38] sm:$0xff]
    %v62 = vld [vmem:[%s2 + $0x40] sm:$0xff]
    %v63 = vld [vmem:[%s2 + $0x48] sm:$0xff]
    %v64 = vld [vmem:[%s2 + $0x50] sm:$0xff]
    %v65 = vld [vmem:[%s2 + $0x58] sm:$0xff]
    %v66 = vld [vmem:[%s2 + $0x60] sm:$0xff]
    %v67 = vld [vmem:[%s2 + $0x68] sm:$0xff]
    %v68 = vld [vmem:[%s2 + $0x70] sm:$0xff]
    %v69 = vld [vmem:[%s2 + $0x78] sm:$0xff]
    %v70 = vld [vmem:[%s2 + $0x80] sm:$0xff]
    %v71 = vld [vmem:[%s2 + $0x88] sm:$0xff]
    %v72 = vld [vmem:[%s2 + $0x90] sm:$0xff]
    %v73 = vld [vmem:[%s2 + $0x98] sm:$0xff]
    %vm74 = vcmask 261120
    %v75 = vsel %vm74, %v50, 0.0
    %76 = vadd.xlane.f32.xlu0 %v75
    %v77 = vpop.xlane.xlu0 %76
    %v78 = vsel %vm74, %v51, 0.0
    %79 = vadd.xlane.f32.xlu0 %v78
    %v80 = vpop.xlane.xlu0 %79
    %v81 = vrcp.pop 32.0
    %v82 = vmul.f32 32.0, %v81
    %v83 = vsub.f32 1.0, %v82
    %v84 = vmul.f32 %v81, %v83
    %v85 = vadd.f32 %v81, %v84
    %vm86 = vweird.f32 %v81
    %v87 = vsel %vm86, %v81, %v85
    %v88 = vmul.f32 %v77, %v87
    %v89 = vmul.f32 %v80, %v87
    %v90 = vsub.f32 %v50, %v88
    %v91 = vsub.f32 %v51, %v89
    %v92 = vmul.f32 %v90, %v90
    %v93 = vmul.f32 %v91, %v91
    %v94 = vsel %vm74, %v92, 0.0
    %95 = vadd.xlane.f32.xlu0 %v94
    %v96 = vpop.xlane.xlu0 %95
    %v97 = vsel %vm74, %v93, 0.0
    %98 = vadd.xlane.f32.xlu0 %v97
    %v99 = vpop.xlane.xlu0 %98
    %v100 = vmul.f32 %v96, %v87
    %v101 = vmul.f32 %v99, %v87
    %v102 = vadd.f32 %v100, 1e-06
    %v103 = vadd.f32 %v101, 1e-06
    %v104 = vrsqrt.pop %v102
    %v105 = vmul.f32 %v104, %v102
    %v106 = vmul.f32 %v105, %v104
    %v107 = vmul.f32 0.5, %v106
    %v108 = vsub.f32 1.5, %v107
    %v109 = vmul.f32 %v104, %v108
    %vm110 = vweird.f32 %v102
    %vm111 = vweird.f32 %v104
    %vm112 = vmor %vm110, %vm111
    %v113 = vsel %vm112, %v104, %v109
    %v114 = vrsqrt.pop %v103
    %v115 = vmul.f32 %v114, %v103
    %v116 = vmul.f32 %v115, %v114
    %v117 = vmul.f32 0.5, %v116
    %v118 = vsub.f32 1.5, %v117
    %v119 = vmul.f32 %v114, %v118
    %vm120 = vweird.f32 %v103
    %vm121 = vweird.f32 %v114
    %vm122 = vmor %vm120, %vm121
    %v123 = vsel %vm122, %v114, %v119
    %v124 = vmul.f32 %v90, %v113
    %v125 = vmul.f32 %v91, %v123
    %v126 = vld [vmem:[%s3] sm:$0xff]
    %v127 = vld [vmem:[%s3 + $0x8] sm:$0xff]
    %v128 = vld [vmem:[%s3 + $0x10] sm:$0xff]
    %v129 = vld [vmem:[%s3 + $0x18] sm:$0xff]
    %v130 = vld [vmem:[%s3 + $0x100] sm:$0x1]
    %v131 = vperm.slane %v130, 0
    %v133 = vsel %vm74, %v124, 0
    %v136 = vsel %vm74, %v125, 0
    %138 = vmatpush.msra.mxu0 0.0
    %139 = vmatpush.msra.mxu0 0.0
    %140 = vmatpush.msra.mxu0 0.0
    %141 = vmatpush.msra.mxu0 0.0
    %142 = vmatpush.msra.mxu0 0.0
    %143 = vmatpush.msra.mxu0 0.0
    %144 = vmatpush.msra.mxu0 0.0
    %145 = vmatpush.msra.mxu0 0.0
    %146 = vmatpush.msra.mxu0 0.0
    %147 = vmatpush.msra.mxu0 0.0
    %148 = vmatpush.msra.mxu0 0.0
    %149 = vmatpush.msra.mxu0 0.0
    %150 = vmatpush.msra.mxu0 %v129
    %151 = vmatpush.msra.mxu0 %v128
    %152 = vmatpush.msra.mxu0 %v127
    %153 = vmatpush.msra.mxu0 %v126
    %154 = vmatmul.f32.gmra.mxu0 %v133
    %v155 = vpop.f32.mrf.mxu0
    %v156 = vadd.f32 %v131, %v155
    %157 = vmatmul.f32.gmra.mxu0 %v136
    %v158 = vpop.f32.mrf.mxu0
    %v159 = vadd.f32 %v131, %v158
    %160 = vdwg.mxu0
    %169 = vrot.lane.b32.xlu0 %v58, 32
    %v170 = vpop.permute.xlu0 %169
    %171 = vrot.lane.b32.xlu0 %v59, 32
    %v172 = vpop.permute.xlu0 %171
    %173 = vrot.lane.b32.xlu0 %v60, 32
    %v174 = vpop.permute.xlu0 %173
    %175 = vrot.lane.b32.xlu0 %v61, 32
    %v176 = vpop.permute.xlu0 %175
    %177 = vrot.lane.b32.xlu0 %v62, 32
    %v178 = vpop.permute.xlu0 %177
    %179 = vrot.lane.b32.xlu0 %v63, 32
    %v180 = vpop.permute.xlu0 %179
    %181 = vrot.lane.b32.xlu0 %v64, 32
    %v182 = vpop.permute.xlu0 %181
    %183 = vrot.lane.b32.xlu0 %v65, 32
    %v184 = vpop.permute.xlu0 %183
    %v193 = vmul.f32 %v156, %v170
    %v194 = vmul.f32 %v159, %v172
    %v195 = vmul.f32 %v156, %v174
    %v196 = vmul.f32 %v159, %v176
    %v197 = vmul.f32 %v156, %v178
    %v198 = vmul.f32 %v159, %v180
    %v199 = vmul.f32 %v156, %v182
    %v200 = vmul.f32 %v159, %v184
    %201 = vrot.lane.b32.xlu0 %v58, 64
    %v202 = vpop.permute.xlu0 %201
    %203 = vrot.lane.b32.xlu0 %v59, 64
    %v204 = vpop.permute.xlu0 %203
    %205 = vrot.lane.b32.xlu0 %v60, 64
    %v206 = vpop.permute.xlu0 %205
    %207 = vrot.lane.b32.xlu0 %v61, 64
    %v208 = vpop.permute.xlu0 %207
    %209 = vrot.lane.b32.xlu0 %v62, 64
    %v210 = vpop.permute.xlu0 %209
    %211 = vrot.lane.b32.xlu0 %v63, 64
    %v212 = vpop.permute.xlu0 %211
    %213 = vrot.lane.b32.xlu0 %v64, 64
    %v214 = vpop.permute.xlu0 %213
    %215 = vrot.lane.b32.xlu0 %v65, 64
    %v216 = vpop.permute.xlu0 %215
    %v225 = vmul.f32 %v156, %v202
    %v226 = vmul.f32 %v159, %v204
    %v227 = vmul.f32 %v156, %v206
    %v228 = vmul.f32 %v159, %v208
    %v229 = vmul.f32 %v156, %v210
    %v230 = vmul.f32 %v159, %v212
    %v231 = vmul.f32 %v156, %v214
    %v232 = vmul.f32 %v159, %v216
    %241 = vrot.lane.b32.xlu0 %v193, 96
    %v242 = vpop.permute.xlu0 %241
    %243 = vrot.lane.b32.xlu0 %v194, 96
    %v244 = vpop.permute.xlu0 %243
    %245 = vrot.lane.b32.xlu0 %v195, 96
    %v246 = vpop.permute.xlu0 %245
    %247 = vrot.lane.b32.xlu0 %v196, 96
    %v248 = vpop.permute.xlu0 %247
    %249 = vrot.lane.b32.xlu0 %v197, 96
    %v250 = vpop.permute.xlu0 %249
    %251 = vrot.lane.b32.xlu0 %v198, 96
    %v252 = vpop.permute.xlu0 %251
    %253 = vrot.lane.b32.xlu0 %v199, 96
    %v254 = vpop.permute.xlu0 %253
    %255 = vrot.lane.b32.xlu0 %v200, 96
    %v256 = vpop.permute.xlu0 %255
    %v258 = vsel %vm74, %v156, 0
    %v261 = vsel %vm74, %v159, 0
    %v263 = vsel %vm74, %v242, 0
    %v265 = vsel %vm74, %v244, 0
    %v267 = vsel %vm74, %v246, 0
    %v269 = vsel %vm74, %v248, 0
    %v271 = vsel %vm74, %v250, 0
    %v273 = vsel %vm74, %v252, 0
    %v275 = vsel %vm74, %v254, 0
    %v277 = vsel %vm74, %v256, 0
    %279 = vmatpush.xpose.msra.mxu0 0.0
    %280 = vmatpush.xpose.msra.mxu0 0.0
    %281 = vmatpush.xpose.msra.mxu0 0.0
    %282 = vmatpush.xpose.msra.mxu0 0.0
    %283 = vmatpush.xpose.msra.mxu0 0.0
    %284 = vmatpush.xpose.msra.mxu0 0.0
    %285 = vmatpush.xpose.msra.mxu0 0.0
    %286 = vmatpush.xpose.msra.mxu0 0.0
    %287 = vmatpush.xpose.msra.mxu0 %v277
    %288 = vmatpush.xpose.msra.mxu0 %v275
    %289 = vmatpush.xpose.msra.mxu0 %v273
    %290 = vmatpush.xpose.msra.mxu0 %v271
    %291 = vmatpush.xpose.msra.mxu0 %v269
    %292 = vmatpush.xpose.msra.mxu0 %v267
    %293 = vmatpush.xpose.msra.mxu0 %v265
    %294 = vmatpush.xpose.msra.mxu0 %v263
    %295 = vmatmul.f32.gmra.mxu0 %v258
    %v296 = vpop.f32.mrf.mxu0
    %v297 = vadd.f32 %v54, %v296
    %298 = vmatmul.f32.gmra.mxu0 %v261
    %v299 = vpop.f32.mrf.mxu0
    %v300 = vadd.f32 %v55, %v299
    %301 = vdwg.mxu0
    %vm302 = vcmask 523264
    %v303 = vsel %vm302, %v297, -inf
    %304 = vmax.xlane.f32.xlu0 %v303
    %v305 = vpop.xlane.xlu0 %304
    %v306 = vsel %vm302, %v300, -inf
    %307 = vmax.xlane.f32.xlu0 %v306
    %v308 = vpop.xlane.xlu0 %307
    %v309 = vsub.f32 %v297, %v305
    %v310 = vsub.f32 %v300, %v308
    %v311 = vmul.f32 %v309, 1.442695
    %v312 = vpow.pop %v311
    %v313 = vmul.f32 %v310, 1.442695
    %v314 = vpow.pop %v313
    %v316 = vsel %vm302, %v312, 0
    %v319 = vsel %vm302, %v314, 0
    %321 = vmatpush.msra.mxu0 0.0
    %322 = vmatpush.msra.mxu0 0.0
    %323 = vmatpush.msra.mxu0 0.0
    %324 = vmatpush.msra.mxu0 0.0
    %325 = vmatpush.msra.mxu0 0.0
    %326 = vmatpush.msra.mxu0 0.0
    %327 = vmatpush.msra.mxu0 0.0
    %328 = vmatpush.msra.mxu0 0.0
    %329 = vmatpush.msra.mxu0 %v73
    %330 = vmatpush.msra.mxu0 %v72
    %331 = vmatpush.msra.mxu0 %v71
    %332 = vmatpush.msra.mxu0 %v70
    %333 = vmatpush.msra.mxu0 %v69
    %334 = vmatpush.msra.mxu0 %v68
    %335 = vmatpush.msra.mxu0 %v67
    %336 = vmatpush.msra.mxu0 %v66
    %337 = vmatmul.f32.gmra.mxu0 %v316
    %v338 = vpop.f32.mrf.mxu0
    %v339 = vadd.f32 0.0, %v338
    %340 = vmatmul.f32.gmra.mxu0 %v319
    %v341 = vpop.f32.mrf.mxu0
    %v342 = vadd.f32 0.0, %v341
    %343 = vdwg.mxu0
    %v344 = vrcp.pop %v339
    %v345 = vmul.f32 %v339, %v344
    %v346 = vsub.f32 1.0, %v345
    %v347 = vmul.f32 %v344, %v346
    %v348 = vadd.f32 %v344, %v347
    %vm349 = vweird.f32 %v339
    %vm350 = vweird.f32 %v344
    %vm351 = vmor %vm349, %vm350
    %v352 = vsel %vm351, %v344, %v348
    %v353 = vand.u32 2147483647, %v339
    %vm354 = vcmp.eq.f32.partialorder %v353, 8.507059e+37
    %v355 = vand.u32 %v339, 2147483648
    %v356 = vor.u32 1.1754944e-38, %v355
    %v357 = vsel %vm354, %v356, %v352
    %v358 = vmul.f32 %v312, %v357
    %v359 = vrcp.pop %v342
    %v360 = vmul.f32 %v342, %v359
    %v361 = vsub.f32 1.0, %v360
    %v362 = vmul.f32 %v359, %v361
    %v363 = vadd.f32 %v359, %v362
    %vm364 = vweird.f32 %v342
    %vm365 = vweird.f32 %v359
    %vm366 = vmor %vm364, %vm365
    %v367 = vsel %vm366, %v359, %v363
    %v368 = vand.u32 2147483647, %v342
    %vm369 = vcmp.eq.f32.partialorder %v368, 8.507059e+37
    %v370 = vand.u32 %v342, 2147483648
    %v371 = vor.u32 1.1754944e-38, %v370
    %v372 = vsel %vm369, %v371, %v367
    %v373 = vmul.f32 %v314, %v372
    %382 = vrot.lane.b32.xlu0 %v225, 64
    %v383 = vpop.permute.xlu0 %382
    %384 = vrot.lane.b32.xlu0 %v226, 64
    %v385 = vpop.permute.xlu0 %384
    %386 = vrot.lane.b32.xlu0 %v227, 64
    %v387 = vpop.permute.xlu0 %386
    %388 = vrot.lane.b32.xlu0 %v228, 64
    %v389 = vpop.permute.xlu0 %388
    %390 = vrot.lane.b32.xlu0 %v229, 64
    %v391 = vpop.permute.xlu0 %390
    %392 = vrot.lane.b32.xlu0 %v230, 64
    %v393 = vpop.permute.xlu0 %392
    %394 = vrot.lane.b32.xlu0 %v231, 64
    %v395 = vpop.permute.xlu0 %394
    %396 = vrot.lane.b32.xlu0 %v232, 64
    %v397 = vpop.permute.xlu0 %396
    %v407 = vsel %vm302, %v358, 0
    %v410 = vsel %vm302, %v373, 0
    %412 = vmatpush.msra.mxu0 0.0
    %413 = vmatpush.msra.mxu0 0.0
    %414 = vmatpush.msra.mxu0 0.0
    %415 = vmatpush.msra.mxu0 0.0
    %416 = vmatpush.msra.mxu0 0.0
    %417 = vmatpush.msra.mxu0 0.0
    %418 = vmatpush.msra.mxu0 0.0
    %419 = vmatpush.msra.mxu0 0.0
    %420 = vmatpush.msra.mxu0 %v397
    %421 = vmatpush.msra.mxu0 %v395
    %422 = vmatpush.msra.mxu0 %v393
    %423 = vmatpush.msra.mxu0 %v391
    %424 = vmatpush.msra.mxu0 %v389
    %425 = vmatpush.msra.mxu0 %v387
    %426 = vmatpush.msra.mxu0 %v385
    %427 = vmatpush.msra.mxu0 %v383
    %428 = vmatmul.f32.gmra.mxu0 %v407
    %v429 = vpop.f32.mrf.mxu0
    %v430 = vadd.f32 0.0, %v429
    %431 = vmatmul.f32.gmra.mxu0 %v410
    %v432 = vpop.f32.mrf.mxu0
    %v433 = vadd.f32 0.0, %v432
    %434 = vdwg.mxu0
    %v435 = vld [vmem:[%s3 + $0x20] sm:$0xff]
    %v436 = vld [vmem:[%s3 + $0x28] sm:$0xff]
    %v437 = vld [vmem:[%s3 + $0x30] sm:$0xff]
    %v438 = vld [vmem:[%s3 + $0x38] sm:$0xff]
    %v440 = vsel %vm74, %v430, 0
    %v443 = vsel %vm74, %v433, 0
    %445 = vmatpush.msra.mxu0 0.0
    %446 = vmatpush.msra.mxu0 0.0
    %447 = vmatpush.msra.mxu0 0.0
    %448 = vmatpush.msra.mxu0 0.0
    %449 = vmatpush.msra.mxu0 0.0
    %450 = vmatpush.msra.mxu0 0.0
    %451 = vmatpush.msra.mxu0 0.0
    %452 = vmatpush.msra.mxu0 0.0
    %453 = vmatpush.msra.mxu0 0.0
    %454 = vmatpush.msra.mxu0 0.0
    %455 = vmatpush.msra.mxu0 0.0
    %456 = vmatpush.msra.mxu0 0.0
    %457 = vmatpush.msra.mxu0 %v438
    %458 = vmatpush.msra.mxu0 %v437
    %459 = vmatpush.msra.mxu0 %v436
    %460 = vmatpush.msra.mxu0 %v435
    %461 = vmatmul.f32.gmra.mxu0 %v440
    %v462 = vpop.f32.mrf.mxu0
    %v463 = vadd.f32 0.0, %v462
    %464 = vmatmul.f32.gmra.mxu0 %v443
    %v465 = vpop.f32.mrf.mxu0
    %v466 = vadd.f32 0.0, %v465
    %467 = vdwg.mxu0
    %v468 = vadd.f32 %v50, %v463
    %v469 = vadd.f32 %v51, %v466
    %v470 = vsel %vm74, %v468, 0.0
    %471 = vadd.xlane.f32.xlu0 %v470
    %v472 = vpop.xlane.xlu0 %471
    %v473 = vsel %vm74, %v469, 0.0
    %474 = vadd.xlane.f32.xlu0 %v473
    %v475 = vpop.xlane.xlu0 %474
    %v476 = vmul.f32 %v472, %v87
    %v477 = vmul.f32 %v475, %v87
    %v478 = vsub.f32 %v468, %v476
    %v479 = vsub.f32 %v469, %v477
    %v480 = vmul.f32 %v478, %v478
    %v481 = vmul.f32 %v479, %v479
    %v482 = vsel %vm74, %v480, 0.0
    %483 = vadd.xlane.f32.xlu0 %v482
    %v484 = vpop.xlane.xlu0 %483
    %v485 = vsel %vm74, %v481, 0.0
    %486 = vadd.xlane.f32.xlu0 %v485
    %v487 = vpop.xlane.xlu0 %486
    %v488 = vmul.f32 %v484, %v87
    %v489 = vmul.f32 %v487, %v87
    %v490 = vadd.f32 %v488, 1e-06
    %v491 = vadd.f32 %v489, 1e-06
    %v492 = vrsqrt.pop %v490
    %v493 = vmul.f32 %v492, %v490
    %v494 = vmul.f32 %v493, %v492
    %v495 = vmul.f32 0.5, %v494
    %v496 = vsub.f32 1.5, %v495
    %v497 = vmul.f32 %v492, %v496
    %vm498 = vweird.f32 %v490
    %vm499 = vweird.f32 %v492
    %vm500 = vmor %vm498, %vm499
    %v501 = vsel %vm500, %v492, %v497
    %v502 = vrsqrt.pop %v491
    %v503 = vmul.f32 %v502, %v491
    %v504 = vmul.f32 %v503, %v502
    %v505 = vmul.f32 0.5, %v504
    %v506 = vsub.f32 1.5, %v505
    %v507 = vmul.f32 %v502, %v506
    %vm508 = vweird.f32 %v491
    %vm509 = vweird.f32 %v502
    %vm510 = vmor %vm508, %vm509
    %v511 = vsel %vm510, %v502, %v507
    %v512 = vmul.f32 %v478, %v501
    %v513 = vmul.f32 %v479, %v511
    %v514 = vld [vmem:[%s3 + $0x40] sm:$0xff]
    %v515 = vld [vmem:[%s3 + $0x48] sm:$0xff]
    %v516 = vld [vmem:[%s3 + $0x50] sm:$0xff]
    %v517 = vld [vmem:[%s3 + $0x58] sm:$0xff]
    %v518 = vld [vmem:[%s3 + $0x108] sm:$0x1]
    %v519 = vperm.slane %v518, 0
    %v521 = vsel %vm74, %v512, 0
    %v524 = vsel %vm74, %v513, 0
    %526 = vmatpush.msra.mxu0 0.0
    %527 = vmatpush.msra.mxu0 0.0
    %528 = vmatpush.msra.mxu0 0.0
    %529 = vmatpush.msra.mxu0 0.0
    %530 = vmatpush.msra.mxu0 0.0
    %531 = vmatpush.msra.mxu0 0.0
    %532 = vmatpush.msra.mxu0 0.0
    %533 = vmatpush.msra.mxu0 0.0
    %534 = vmatpush.msra.mxu0 0.0
    %535 = vmatpush.msra.mxu0 0.0
    %536 = vmatpush.msra.mxu0 0.0
    %537 = vmatpush.msra.mxu0 0.0
    %538 = vmatpush.msra.mxu0 %v517
    %539 = vmatpush.msra.mxu0 %v516
    %540 = vmatpush.msra.mxu0 %v515
    %541 = vmatpush.msra.mxu0 %v514
    %542 = vmatmul.f32.gmra.mxu0 %v521
    %v543 = vpop.f32.mrf.mxu0
    %v544 = vadd.f32 %v519, %v543
    %545 = vmatmul.f32.gmra.mxu0 %v524
    %v546 = vpop.f32.mrf.mxu0
    %v547 = vadd.f32 %v519, %v546
    %548 = vdwg.mxu0
    %v549 = vld [vmem:[%s3 + $0x60] sm:$0xff]
    %v550 = vld [vmem:[%s3 + $0x68] sm:$0xff]
    %v551 = vld [vmem:[%s3 + $0x70] sm:$0xff]
    %v552 = vld [vmem:[%s3 + $0x78] sm:$0xff]
    %v554 = vsel %vm74, %v52, 0
    %v557 = vsel %vm74, %v53, 0
    %559 = vmatpush.msra.mxu0 0.0
    %560 = vmatpush.msra.mxu0 0.0
    %561 = vmatpush.msra.mxu0 0.0
    %562 = vmatpush.msra.mxu0 0.0
    %563 = vmatpush.msra.mxu0 0.0
    %564 = vmatpush.msra.mxu0 0.0
    %565 = vmatpush.msra.mxu0 0.0
    %566 = vmatpush.msra.mxu0 0.0
    %567 = vmatpush.msra.mxu0 0.0
    %568 = vmatpush.msra.mxu0 0.0
    %569 = vmatpush.msra.mxu0 0.0
    %570 = vmatpush.msra.mxu0 0.0
    %571 = vmatpush.msra.mxu0 %v552
    %572 = vmatpush.msra.mxu0 %v551
    %573 = vmatpush.msra.mxu0 %v550
    %574 = vmatpush.msra.mxu0 %v549
    %575 = vmatmul.f32.gmra.mxu0 %v554
    %v576 = vpop.f32.mrf.mxu0
    %v577 = vadd.f32 0.0, %v576
    %578 = vmatmul.f32.gmra.mxu0 %v557
    %v579 = vpop.f32.mrf.mxu0
    %v580 = vadd.f32 0.0, %v579
    %581 = vdwg.mxu0
    %v582 = vmul.f32 %v577, %v58
    %v583 = vmul.f32 %v580, %v59
    %v584 = vmul.f32 %v577, %v60
    %v585 = vmul.f32 %v580, %v61
    %v586 = vmul.f32 %v577, %v62
    %v587 = vmul.f32 %v580, %v63
    %v588 = vmul.f32 %v577, %v64
    %v589 = vmul.f32 %v580, %v65
    %v590 = vmul.f32 %v577, %v170
    %v591 = vmul.f32 %v580, %v172
    %v592 = vmul.f32 %v577, %v174
    %v593 = vmul.f32 %v580, %v176
    %v594 = vmul.f32 %v577, %v178
    %v595 = vmul.f32 %v580, %v180
    %v596 = vmul.f32 %v577, %v182
    %v597 = vmul.f32 %v580, %v184
    %v599 = vsel %vm74, %v544, 0
    %v602 = vsel %vm74, %v547, 0
    %v605 = vsel %vm74, %v582, 0
    %v608 = vsel %vm74, %v583, 0
    %v611 = vsel %vm74, %v584, 0
    %v614 = vsel %vm74, %v585, 0
    %v617 = vsel %vm74, %v586, 0
    %v620 = vsel %vm74, %v587, 0
    %v623 = vsel %vm74, %v588, 0
    %v626 = vsel %vm74, %v589, 0
    %628 = vmatpush.xpose.msra.mxu0 0.0
    %629 = vmatpush.xpose.msra.mxu0 0.0
    %630 = vmatpush.xpose.msra.mxu0 0.0
    %631 = vmatpush.xpose.msra.mxu0 0.0
    %632 = vmatpush.xpose.msra.mxu0 0.0
    %633 = vmatpush.xpose.msra.mxu0 0.0
    %634 = vmatpush.xpose.msra.mxu0 0.0
    %635 = vmatpush.xpose.msra.mxu0 0.0
    %636 = vmatpush.xpose.msra.mxu0 %v626
    %637 = vmatpush.xpose.msra.mxu0 %v623
    %638 = vmatpush.xpose.msra.mxu0 %v620
    %639 = vmatpush.xpose.msra.mxu0 %v617
    %640 = vmatpush.xpose.msra.mxu0 %v614
    %641 = vmatpush.xpose.msra.mxu0 %v611
    %642 = vmatpush.xpose.msra.mxu0 %v608
    %643 = vmatpush.xpose.msra.mxu0 %v605
    %644 = vmatmul.f32.gmra.mxu0 %v599
    %v645 = vpop.f32.mrf.mxu0
    %v646 = vadd.f32 %v56, %v645
    %647 = vmatmul.f32.gmra.mxu0 %v602
    %v648 = vpop.f32.mrf.mxu0
    %v649 = vadd.f32 %v57, %v648
    %650 = vdwg.mxu0
    %v651 = vsel %vm302, %v646, -inf
    %652 = vmax.xlane.f32.xlu0 %v651
    %v653 = vpop.xlane.xlu0 %652
    %v654 = vsel %vm302, %v649, -inf
    %655 = vmax.xlane.f32.xlu0 %v654
    %v656 = vpop.xlane.xlu0 %655
    %v657 = vsub.f32 %v646, %v653
    %v658 = vsub.f32 %v649, %v656
    %v659 = vmul.f32 %v657, 1.442695
    %v660 = vpow.pop %v659
    %v661 = vmul.f32 %v658, 1.442695
    %v662 = vpow.pop %v661
    %v664 = vsel %vm302, %v660, 0
    %v667 = vsel %vm302, %v662, 0
    %669 = vmatpush.msra.mxu0 0.0
    %670 = vmatpush.msra.mxu0 0.0
    %671 = vmatpush.msra.mxu0 0.0
    %672 = vmatpush.msra.mxu0 0.0
    %673 = vmatpush.msra.mxu0 0.0
    %674 = vmatpush.msra.mxu0 0.0
    %675 = vmatpush.msra.mxu0 0.0
    %676 = vmatpush.msra.mxu0 0.0
    %677 = vmatpush.msra.mxu0 %v73
    %678 = vmatpush.msra.mxu0 %v72
    %679 = vmatpush.msra.mxu0 %v71
    %680 = vmatpush.msra.mxu0 %v70
    %681 = vmatpush.msra.mxu0 %v69
    %682 = vmatpush.msra.mxu0 %v68
    %683 = vmatpush.msra.mxu0 %v67
    %684 = vmatpush.msra.mxu0 %v66
    %685 = vmatmul.f32.gmra.mxu0 %v664
    %v686 = vpop.f32.mrf.mxu0
    %v687 = vadd.f32 0.0, %v686
    %688 = vmatmul.f32.gmra.mxu0 %v667
    %v689 = vpop.f32.mrf.mxu0
    %v690 = vadd.f32 0.0, %v689
    %691 = vdwg.mxu0
    %v692 = vrcp.pop %v687
    %v693 = vmul.f32 %v687, %v692
    %v694 = vsub.f32 1.0, %v693
    %v695 = vmul.f32 %v692, %v694
    %v696 = vadd.f32 %v692, %v695
    %vm697 = vweird.f32 %v687
    %vm698 = vweird.f32 %v692
    %vm699 = vmor %vm697, %vm698
    %v700 = vsel %vm699, %v692, %v696
    %v701 = vand.u32 2147483647, %v687
    %vm702 = vcmp.eq.f32.partialorder %v701, 8.507059e+37
    %v703 = vand.u32 %v687, 2147483648
    %v704 = vor.u32 1.1754944e-38, %v703
    %v705 = vsel %vm702, %v704, %v700
    %v706 = vmul.f32 %v660, %v705
    %v707 = vrcp.pop %v690
    %v708 = vmul.f32 %v690, %v707
    %v709 = vsub.f32 1.0, %v708
    %v710 = vmul.f32 %v707, %v709
    %v711 = vadd.f32 %v707, %v710
    %vm712 = vweird.f32 %v690
    %vm713 = vweird.f32 %v707
    %vm714 = vmor %vm712, %vm713
    %v715 = vsel %vm714, %v707, %v711
    %v716 = vand.u32 2147483647, %v690
    %vm717 = vcmp.eq.f32.partialorder %v716, 8.507059e+37
    %v718 = vand.u32 %v690, 2147483648
    %v719 = vor.u32 1.1754944e-38, %v718
    %v720 = vsel %vm717, %v719, %v715
    %v721 = vmul.f32 %v662, %v720
    %730 = vrot.lane.b32.xlu0 %v590, 96
    %v731 = vpop.permute.xlu0 %730
    %732 = vrot.lane.b32.xlu0 %v591, 96
    %v733 = vpop.permute.xlu0 %732
    %734 = vrot.lane.b32.xlu0 %v592, 96
    %v735 = vpop.permute.xlu0 %734
    %736 = vrot.lane.b32.xlu0 %v593, 96
    %v737 = vpop.permute.xlu0 %736
    %738 = vrot.lane.b32.xlu0 %v594, 96
    %v739 = vpop.permute.xlu0 %738
    %740 = vrot.lane.b32.xlu0 %v595, 96
    %v741 = vpop.permute.xlu0 %740
    %742 = vrot.lane.b32.xlu0 %v596, 96
    %v743 = vpop.permute.xlu0 %742
    %744 = vrot.lane.b32.xlu0 %v597, 96
    %v745 = vpop.permute.xlu0 %744
    %v755 = vsel %vm302, %v706, 0
    %v758 = vsel %vm302, %v721, 0
    %760 = vmatpush.msra.mxu0 0.0
    %761 = vmatpush.msra.mxu0 0.0
    %762 = vmatpush.msra.mxu0 0.0
    %763 = vmatpush.msra.mxu0 0.0
    %764 = vmatpush.msra.mxu0 0.0
    %765 = vmatpush.msra.mxu0 0.0
    %766 = vmatpush.msra.mxu0 0.0
    %767 = vmatpush.msra.mxu0 0.0
    %768 = vmatpush.msra.mxu0 %v745
    %769 = vmatpush.msra.mxu0 %v743
    %770 = vmatpush.msra.mxu0 %v741
    %771 = vmatpush.msra.mxu0 %v739
    %772 = vmatpush.msra.mxu0 %v737
    %773 = vmatpush.msra.mxu0 %v735
    %774 = vmatpush.msra.mxu0 %v733
    %775 = vmatpush.msra.mxu0 %v731
    %776 = vmatmul.f32.gmra.mxu0 %v755
    %v777 = vpop.f32.mrf.mxu0
    %v778 = vadd.f32 0.0, %v777
    %779 = vmatmul.f32.gmra.mxu0 %v758
    %v780 = vpop.f32.mrf.mxu0
    %v781 = vadd.f32 0.0, %v780
    %782 = vdwg.mxu0
    %v783 = vld [vmem:[%s3 + $0x80] sm:$0xff]
    %v784 = vld [vmem:[%s3 + $0x88] sm:$0xff]
    %v785 = vld [vmem:[%s3 + $0x90] sm:$0xff]
    %v786 = vld [vmem:[%s3 + $0x98] sm:$0xff]
    %v788 = vsel %vm74, %v778, 0
    %v791 = vsel %vm74, %v781, 0
    %793 = vmatpush.msra.mxu0 0.0
    %794 = vmatpush.msra.mxu0 0.0
    %795 = vmatpush.msra.mxu0 0.0
    %796 = vmatpush.msra.mxu0 0.0
    %797 = vmatpush.msra.mxu0 0.0
    %798 = vmatpush.msra.mxu0 0.0
    %799 = vmatpush.msra.mxu0 0.0
    %800 = vmatpush.msra.mxu0 0.0
    %801 = vmatpush.msra.mxu0 0.0
    %802 = vmatpush.msra.mxu0 0.0
    %803 = vmatpush.msra.mxu0 0.0
    %804 = vmatpush.msra.mxu0 0.0
    %805 = vmatpush.msra.mxu0 %v786
    %806 = vmatpush.msra.mxu0 %v785
    %807 = vmatpush.msra.mxu0 %v784
    %808 = vmatpush.msra.mxu0 %v783
    %809 = vmatmul.f32.gmra.mxu0 %v788
    %v810 = vpop.f32.mrf.mxu0
    %v811 = vadd.f32 0.0, %v810
    %812 = vmatmul.f32.gmra.mxu0 %v791
    %v813 = vpop.f32.mrf.mxu0
    %v814 = vadd.f32 0.0, %v813
    %815 = vdwg.mxu0
    %v816 = vadd.f32 %v468, %v811
    %v817 = vadd.f32 %v469, %v814
    %v818 = vsel %vm74, %v816, 0.0
    %819 = vadd.xlane.f32.xlu0 %v818
    %v820 = vpop.xlane.xlu0 %819
    %v821 = vsel %vm74, %v817, 0.0
    %822 = vadd.xlane.f32.xlu0 %v821
    %v823 = vpop.xlane.xlu0 %822
    %v824 = vmul.f32 %v820, %v87
    %v825 = vmul.f32 %v823, %v87
    %v826 = vsub.f32 %v816, %v824
    %v827 = vsub.f32 %v817, %v825
    %v828 = vmul.f32 %v826, %v826
    %v829 = vmul.f32 %v827, %v827
    %v830 = vsel %vm74, %v828, 0.0
    %831 = vadd.xlane.f32.xlu0 %v830
    %v832 = vpop.xlane.xlu0 %831
    %v833 = vsel %vm74, %v829, 0.0
    %834 = vadd.xlane.f32.xlu0 %v833
    %v835 = vpop.xlane.xlu0 %834
    %v836 = vmul.f32 %v832, %v87
    %v837 = vmul.f32 %v835, %v87
    %v838 = vadd.f32 %v836, 1e-06
    %v839 = vadd.f32 %v837, 1e-06
    %v840 = vrsqrt.pop %v838
    %v841 = vmul.f32 %v840, %v838
    %v842 = vmul.f32 %v841, %v840
    %v843 = vmul.f32 0.5, %v842
    %v844 = vsub.f32 1.5, %v843
    %v845 = vmul.f32 %v840, %v844
    %vm846 = vweird.f32 %v838
    %vm847 = vweird.f32 %v840
    %vm848 = vmor %vm846, %vm847
    %v849 = vsel %vm848, %v840, %v845
    %v850 = vrsqrt.pop %v839
    %v851 = vmul.f32 %v850, %v839
    %v852 = vmul.f32 %v851, %v850
    %v853 = vmul.f32 0.5, %v852
    %v854 = vsub.f32 1.5, %v853
    %v855 = vmul.f32 %v850, %v854
    %vm856 = vweird.f32 %v839
    %vm857 = vweird.f32 %v850
    %vm858 = vmor %vm856, %vm857
    %v859 = vsel %vm858, %v850, %v855
    %v860 = vmul.f32 %v826, %v849
    %v861 = vmul.f32 %v827, %v859
    %v862 = vld [vmem:[%s3 + $0xa0] sm:$0xff]
    %v863 = vld [vmem:[%s3 + $0xa8] sm:$0xff]
    %v864 = vld [vmem:[%s3 + $0xb0] sm:$0xff]
    %v865 = vld [vmem:[%s3 + $0xb8] sm:$0xff]
    %v866 = vld [vmem:[%s3 + $0x110] sm:$0x1]
    %v867 = vperm.slane %v866, 0
    %v869 = vsel %vm74, %v860, 0
    %v872 = vsel %vm74, %v861, 0
    %874 = vmatpush.msra.mxu0 0.0
    %875 = vmatpush.msra.mxu0 0.0
    %876 = vmatpush.msra.mxu0 0.0
    %877 = vmatpush.msra.mxu0 0.0
    %878 = vmatpush.msra.mxu0 0.0
    %879 = vmatpush.msra.mxu0 0.0
    %880 = vmatpush.msra.mxu0 0.0
    %881 = vmatpush.msra.mxu0 0.0
    %882 = vmatpush.msra.mxu0 0.0
    %883 = vmatpush.msra.mxu0 0.0
    %884 = vmatpush.msra.mxu0 0.0
    %885 = vmatpush.msra.mxu0 0.0
    %886 = vmatpush.msra.mxu0 %v865
    %887 = vmatpush.msra.mxu0 %v864
    %888 = vmatpush.msra.mxu0 %v863
    %889 = vmatpush.msra.mxu0 %v862
    %890 = vmatmul.f32.gmra.mxu0 %v869
    %v891 = vpop.f32.mrf.mxu0
    %v892 = vadd.f32 %v867, %v891
    %893 = vmatmul.f32.gmra.mxu0 %v872
    %v894 = vpop.f32.mrf.mxu0
    %v895 = vadd.f32 %v867, %v894
    %896 = vdwg.mxu0
    %v897 = vmax.f32 %v892, 0.0
    %v898 = vmax.f32 %v895, 0.0
    %v899 = vld [vmem:[%s3 + $0xc0] sm:$0xff]
    %v900 = vld [vmem:[%s3 + $0xc8] sm:$0xff]
    %v901 = vld [vmem:[%s3 + $0xd0] sm:$0xff]
    %v902 = vld [vmem:[%s3 + $0xd8] sm:$0xff]
    %v903 = vld [vmem:[%s3 + $0xe0] sm:$0xff]
    %v904 = vld [vmem:[%s3 + $0xe8] sm:$0xff]
    %v905 = vld [vmem:[%s3 + $0xf0] sm:$0xff]
    %v906 = vld [vmem:[%s3 + $0xf8] sm:$0xff]
    %v908 = vsel %vm302, %v897, 0
    %v911 = vsel %vm302, %v898, 0
    %913 = vmatpush.msra.mxu0 0.0
    %914 = vmatpush.msra.mxu0 0.0
    %915 = vmatpush.msra.mxu0 0.0
    %916 = vmatpush.msra.mxu0 0.0
    %917 = vmatpush.msra.mxu0 0.0
    %918 = vmatpush.msra.mxu0 0.0
    %919 = vmatpush.msra.mxu0 0.0
    %920 = vmatpush.msra.mxu0 0.0
    %921 = vmatpush.msra.mxu0 %v906
    %922 = vmatpush.msra.mxu0 %v905
    %923 = vmatpush.msra.mxu0 %v904
    %924 = vmatpush.msra.mxu0 %v903
    %925 = vmatpush.msra.mxu0 %v902
    %926 = vmatpush.msra.mxu0 %v901
    %927 = vmatpush.msra.mxu0 %v900
    %928 = vmatpush.msra.mxu0 %v899
    %929 = vmatmul.f32.gmra.mxu0 %v908
    %v930 = vpop.f32.mrf.mxu0
    %v931 = vadd.f32 0.0, %v930
    %932 = vmatmul.f32.gmra.mxu0 %v911
    %v933 = vpop.f32.mrf.mxu0
    %v934 = vadd.f32 0.0, %v933
    %935 = vdwg.mxu0
    %v936 = vadd.f32 %v816, %v931
    %v937 = vadd.f32 %v817, %v934
    %v938 = vld [vmem:[%s3 + $0x118] sm:$0x1]
    %v939 = vperm.slane %v938, 0
    %v940 = vadd.f32 %v936, %v939
    %v941 = vadd.f32 %v937, %v939
    %942 = vst.msk [vmem:[#allocation7] sm:$0xff] %vm74, %v940
    %943 = vst.msk [vmem:[#allocation7 + $0x8] sm:$0xff] %vm74, %v941
    // Predicated region
    $region26: #{decoder_block_pallas.1} parent=1 // pred_check
      _
    $region27: #{decoder_block_pallas.1} parent=1 // pred_check_branch
      %945 = sbr.rel (0) target = $region29
    $region28: #{decoder_block_pallas.1} parent=1 // pred_region
      %947 = vsyncadd [#allocation4], 0
      %s948 = sshll.u32 [#allocation7], 4
      %s949 = int_to_ptr.vmem [resolvable:$true] %s948
      %s950 = sshll.u32 %s4, 4
      %s951 = int_to_ptr.hbm [resolvable:$true] %s950
      %956 = dma.vmem_to_hbm [thread:$0]  %s949, 256, %s951, [#allocation4], 128, 128, 8
    $region29: #{decoder_block_pallas.1} parent=1 // pred_fallthru
      _
    // Predicated region
    $region30: #{decoder_block_pallas.1} parent=1 // pred_check
      _
    $region31: #{decoder_block_pallas.1} parent=1 // pred_check_branch
      %958 = sbr.rel (0) target = $region33
    $region32: #{decoder_block_pallas.1} parent=1 // pred_region
      %960 = dma.done [#allocation4], 256
    $region33: #{decoder_block_pallas.1} parent=1 // pred_fallthru
      _
    %961 = vsyncpa [#allocation3], 1
    %962 = vsyncpa [#allocation6], 1
    %963 = vsyncpa [#allocation4], 1

</llo_original>
